<compile_context>
chip_gen: v5e
topology: v5e:2x2
jax: 0.10.0
libtpu: 0.0.40
codegen_flags: <defaults>
</compile_context>

<pallas_src>
import functools
import math

import jax
import jax.numpy as jnp
from jax.experimental import pallas as pl
from jax.experimental.pallas import tpu as pltpu


_EXP_NEG_100 = math.exp(-100.0)  # PyTorch BCE clamps log at -100 => pt floor


def _focal_kernel(x_ref, t_ref, out_ref, *, alpha, gamma, hw, s_block, need_mask):
    # x_ref: (C, s_block, 128) logits, t_ref: (s_block, 128) class ids,
    # out_ref: (1, 1, 128) per-tile lane partial sums.
    c_count = x_ref.shape[0]

    if need_mask:
        i = pl.program_id(1)
        row = jax.lax.broadcasted_iota(jnp.int32, (s_block, 128), 0)
        col = jax.lax.broadcasted_iota(jnp.int32, (s_block, 128), 1)
        pos = (i * s_block + row) * 128 + col
        valid = pos < hw
    else:
        valid = None

    def load_c(c):
        xc = x_ref[c].astype(jnp.float32)
        if need_mask:
            # sanitize padded / out-of-bounds tail so exp/log stay finite
            xc = jnp.where(valid, xc, 0.0)
        return xc

    # Channel max via pure VPU maxes over dense (s_block,128) slabs.
    m = load_c(0)
    for c in range(1, c_count):
        m = jnp.maximum(m, load_c(c))

    # Softmax denominator; only the background (channel 0) numerator is needed.
    e0 = jnp.exp(load_c(0) - m)
    denom = e0
    for c in range(1, c_count):
        denom = denom + jnp.exp(load_c(c) - m)

    bg_prob = e0 / denom                 # exact divide (keeps 1e-5 tolerance)
    fg_prob = 1.0 - bg_prob

    bt = t_ref[...] != 0                 # works for any integer target dtype

    # In the PyTorch module BCE(bg_prob, 1-bt) and BCE(fg_prob, bt) are the
    # same expression, so combined = beta*fg + (1-beta)*bg == focal for any
    # beta.  pt = exp(-bce) == max(p_sel, exp(-100)) (no extra EUP exp).
    p_sel = jnp.where(bt, fg_prob, bg_prob)
    bce = -jnp.maximum(jnp.log(p_sel), -100.0)
    pt = jnp.maximum(p_sel, _EXP_NEG_100)
    one_minus_pt = 1.0 - pt

    g = float(gamma)
    if g == 0.0:
        mod = None
    elif g.is_integer() and 1.0 <= g <= 4.0:
        mod = one_minus_pt
        for _ in range(int(g) - 1):
            mod = mod * one_minus_pt     # VPU multiplies, no EUP pow
    else:
        mod = jnp.power(one_minus_pt, g)

    focal = bce if mod is None else mod * bce
    if float(alpha) != 1.0:
        focal = float(alpha) * focal
    if need_mask:
        focal = jnp.where(valid, focal, 0.0)

    # One cheap sublane reduce per (up to 256K-pixel) tile; lane-dense store.
    out_ref[0, 0] = jnp.sum(focal, axis=0)


def binary_focal_loss(inputs, targets, *, alpha=1.0, gamma=2.0, beta=0.5,
                      reduction="mean"):
    """inputs: (N, C, H, W) float logits (f32 or bf16); targets: (N, H, W) ids.

    `beta` is accepted for API parity but is mathematically a no-op in the
    original PyTorch module (the fg and bg BCE terms are identical).
    """
    del beta  # no effect on the result (matches the PyTorch module exactly)
    N, C, H, W = inputs.shape
    hw = H * W
    hw128 = ((hw + 127) // 128) * 128

    # Free reshapes only when H*W is a multiple of 128 (the common case).
    x = inputs.reshape(N, C, hw)
    t = targets.reshape(N, hw)            # keep native (possibly narrow) dtype
    if hw128 != hw:
        # TODO(synk): this pad costs one extra HBM copy; only taken when H*W
        # is not a multiple of 128.
        x = jnp.pad(x, ((0, 0), (0, 0), (0, hw128 - hw)))
        t = jnp.pad(t, ((0, 0), (0, hw128 - hw)))
    s_total = hw128 // 128
    x = x.reshape(N, C, s_total, 128)
    t = t.reshape(N, s_total, 128)

    # Generation-aware VMEM budget (v5e/v6e: 128 MiB, v7x: 64 MiB per core).
    try:
        vmem_phys = pltpu.get_tpu_info().vmem_capacity_bytes
    except Exception:
        vmem_phys = 64 << 20              # conservative fallback (v7x-safe)
    vmem_limit = min(int(vmem_phys * 3 // 4), 100 << 20)

    x_bytes = jnp.dtype(x.dtype).itemsize
    t_bytes = jnp.dtype(t.dtype).itemsize

    # Tile: up to 2048 sublane-rows (= 256K pixels) per grid step, shrunk until
    # double-buffered input tiles + in-kernel f32 temporaries fit the budget.
    s_block = min(2048, s_total)
    if s_block < s_total:
        s_block = max(8, (s_block // 8) * 8)   # keep (8,128) block alignment

    def _fits(s):
        io_bytes = 2 * s * 128 * (C * x_bytes + t_bytes)   # double-buffered in
        tmp_bytes = 10 * s * 128 * 4                        # live f32 temps
        return io_bytes + tmp_bytes <= int(vmem_limit * 0.7)

    while s_block > 8 and not _fits(s_block):
        s_block = max(8, s_block // 2)

    num_tiles = (s_total + s_block - 1) // s_block
    need_mask = (num_tiles * s_block * 128) > hw

    kernel = functools.partial(_focal_kernel, alpha=float(alpha),
                               gamma=float(gamma), hw=hw, s_block=s_block,
                               need_mask=need_mask)

    partials = pl.pallas_call(
        kernel,
        out_shape=jax.ShapeDtypeStruct((N, num_tiles, 1, 128), jnp.float32),
        grid_spec=pltpu.PrefetchScalarGridSpec(
            num_scalar_prefetch=0,
            grid=(N, num_tiles),
            in_specs=[
                pl.BlockSpec((None, C, s_block, 128), lambda n, i: (n, 0, i, 0)),
                pl.BlockSpec((None, s_block, 128), lambda n, i: (n, i, 0)),
            ],
            out_specs=pl.BlockSpec((None, 1, 1, 128), lambda n, i: (n, i, 0, 0)),
        ),
        compiler_params=pltpu.CompilerParams(
            dimension_semantics=("parallel", "parallel"),
            vmem_limit_bytes=vmem_limit),
    )(x, t)

    total = jnp.sum(partials)
    if reduction == "mean":
        return total / jnp.float32(N * hw)
    elif reduction == "sum":
        return total
    else:
        # TODO(synk): 'none' reduction (per-element loss map) is not
        # implemented; the kernel produces per-tile partial sums only.
        raise NotImplementedError("reduction='none' not supported in kernel")


def _reference(inputs, targets, alpha=1.0, gamma=2.0, beta=0.5):
    bt = (targets != 0).astype(jnp.float32)
    probs = jax.nn.softmax(inputs.astype(jnp.float32), axis=1)
    bg = probs[:, 0]
    fg = 1.0 - bg
    log_bg = jnp.maximum(jnp.log(bg), -100.0)
    log_fg = jnp.maximum(jnp.log(fg), -100.0)
    bg_bce = -((1.0 - bt) * log_bg + bt * log_fg)
    fg_bce = -(bt * log_fg + (1.0 - bt) * log_bg)
    bg_fl = alpha * (1.0 - jnp.exp(-bg_bce)) ** gamma * bg_bce
    fg_fl = alpha * (1.0 - jnp.exp(-fg_bce)) ** gamma * fg_bce
    return jnp.mean(beta * fg_fl + (1.0 - beta) * bg_fl)


if __name__ == "__main__":
    key = jax.random.PRNGKey(0)
    k1, k2 = jax.random.split(key)

    N, C, H, W = 2, 4, 16, 16
    inputs = jax.random.normal(k1, (N, C, H, W), dtype=jnp.float32)
    targets = jax.random.randint(k2, (N, H, W), 0, C, dtype=jnp.int32)

    loss = binary_focal_loss(inputs, targets, alpha=1.0, gamma=2.0, beta=0.5,
                             reduction="mean")
    loss = jax.block_until_ready(loss)

    ref = _reference(inputs, targets)
    assert jnp.allclose(loss, ref, rtol=1e-5, atol=1e-6), (loss, ref)

    print("KERNEL_OK")
</pallas_src>

<mosaic_0001>
module attributes {stable_mosaic.version = 11 : i64} {
  func.func @_focal_kernel(%arg0: i32, %arg1: i32, %arg2: memref<1x4x2x128xf32, #tpu.memory_space<vmem>>, %arg3: memref<1x2x128xi32, #tpu.memory_space<vmem>>, %arg4: memref<1x1x1x128xf32, #tpu.memory_space<vmem>>) attributes {dimension_semantics = [#tpu.dimension_semantics<parallel>, #tpu.dimension_semantics<parallel>], iteration_bounds = array<i64: 2, 1>, scalar_prefetch = 0 : i64, scratch_operands = 0 : i64, tpu.core_type = #tpu.core_type<tc>, window_params = [{transform_indices = @transform_0, window_bounds = array<i64: 1, 4, 2, 128>}, {transform_indices = @transform_1, window_bounds = array<i64: 1, 2, 128>}, {transform_indices = @transform_2, window_bounds = array<i64: 1, 1, 1, 128>}]} {
    %c0 = arith.constant 0 : index
    %c0_0 = arith.constant 0 : index
    %c0_1 = arith.constant 0 : index
    %c0_2 = arith.constant 0 : index
    %0 = vector.load %arg2[%c0, %c0_0, %c0_1, %c0_2] : memref<1x4x2x128xf32, #tpu.memory_space<vmem>>, vector<1x1x2x128xf32>
    %1 = vector.shape_cast %0 : vector<1x1x2x128xf32> to vector<2x128xf32>
    %c0_3 = arith.constant 0 : index
    %c1 = arith.constant 1 : index
    %c0_4 = arith.constant 0 : index
    %c0_5 = arith.constant 0 : index
    %2 = vector.load %arg2[%c0_3, %c1, %c0_4, %c0_5] : memref<1x4x2x128xf32, #tpu.memory_space<vmem>>, vector<1x1x2x128xf32>
    %3 = vector.shape_cast %2 : vector<1x1x2x128xf32> to vector<2x128xf32>
    %4 = arith.maximumf %1, %3 : vector<2x128xf32>
    %c0_6 = arith.constant 0 : index
    %c2 = arith.constant 2 : index
    %c0_7 = arith.constant 0 : index
    %c0_8 = arith.constant 0 : index
    %5 = vector.load %arg2[%c0_6, %c2, %c0_7, %c0_8] : memref<1x4x2x128xf32, #tpu.memory_space<vmem>>, vector<1x1x2x128xf32>
    %6 = vector.shape_cast %5 : vector<1x1x2x128xf32> to vector<2x128xf32>
    %7 = arith.maximumf %4, %6 : vector<2x128xf32>
    %c0_9 = arith.constant 0 : index
    %c3 = arith.constant 3 : index
    %c0_10 = arith.constant 0 : index
    %c0_11 = arith.constant 0 : index
    %8 = vector.load %arg2[%c0_9, %c3, %c0_10, %c0_11] : memref<1x4x2x128xf32, #tpu.memory_space<vmem>>, vector<1x1x2x128xf32>
    %9 = vector.shape_cast %8 : vector<1x1x2x128xf32> to vector<2x128xf32>
    %10 = arith.maximumf %7, %9 : vector<2x128xf32>
    %c0_12 = arith.constant 0 : index
    %c0_13 = arith.constant 0 : index
    %c0_14 = arith.constant 0 : index
    %c0_15 = arith.constant 0 : index
    %11 = vector.load %arg2[%c0_12, %c0_13, %c0_14, %c0_15] : memref<1x4x2x128xf32, #tpu.memory_space<vmem>>, vector<1x1x2x128xf32>
    %12 = vector.shape_cast %11 : vector<1x1x2x128xf32> to vector<2x128xf32>
    %13 = arith.subf %12, %10 : vector<2x128xf32>
    %14 = math.exp %13 : vector<2x128xf32>
    %c0_16 = arith.constant 0 : index
    %c1_17 = arith.constant 1 : index
    %c0_18 = arith.constant 0 : index
    %c0_19 = arith.constant 0 : index
    %15 = vector.load %arg2[%c0_16, %c1_17, %c0_18, %c0_19] : memref<1x4x2x128xf32, #tpu.memory_space<vmem>>, vector<1x1x2x128xf32>
    %16 = vector.shape_cast %15 : vector<1x1x2x128xf32> to vector<2x128xf32>
    %17 = arith.subf %16, %10 : vector<2x128xf32>
    %18 = math.exp %17 : vector<2x128xf32>
    %19 = arith.addf %14, %18 : vector<2x128xf32>
    %c0_20 = arith.constant 0 : index
    %c2_21 = arith.constant 2 : index
    %c0_22 = arith.constant 0 : index
    %c0_23 = arith.constant 0 : index
    %20 = vector.load %arg2[%c0_20, %c2_21, %c0_22, %c0_23] : memref<1x4x2x128xf32, #tpu.memory_space<vmem>>, vector<1x1x2x128xf32>
    %21 = vector.shape_cast %20 : vector<1x1x2x128xf32> to vector<2x128xf32>
    %22 = arith.subf %21, %10 : vector<2x128xf32>
    %23 = math.exp %22 : vector<2x128xf32>
    %24 = arith.addf %19, %23 : vector<2x128xf32>
    %c0_24 = arith.constant 0 : index
    %c3_25 = arith.constant 3 : index
    %c0_26 = arith.constant 0 : index
    %c0_27 = arith.constant 0 : index
    %25 = vector.load %arg2[%c0_24, %c3_25, %c0_26, %c0_27] : memref<1x4x2x128xf32, #tpu.memory_space<vmem>>, vector<1x1x2x128xf32>
    %26 = vector.shape_cast %25 : vector<1x1x2x128xf32> to vector<2x128xf32>
    %27 = arith.subf %26, %10 : vector<2x128xf32>
    %28 = math.exp %27 : vector<2x128xf32>
    %29 = arith.addf %24, %28 : vector<2x128xf32>
    %30 = arith.divf %14, %29 : vector<2x128xf32>
    %cst = arith.constant 1.000000e+00 : f32
    %31 = vector.broadcast %cst : f32 to vector<2x128xf32>
    %32 = arith.subf %31, %30 : vector<2x128xf32>
    %c0_28 = arith.constant 0 : index
    %c0_29 = arith.constant 0 : index
    %c0_30 = arith.constant 0 : index
    %33 = vector.load %arg3[%c0_28, %c0_29, %c0_30] : memref<1x2x128xi32, #tpu.memory_space<vmem>>, vector<1x2x128xi32>
    %34 = vector.shape_cast %33 : vector<1x2x128xi32> to vector<2x128xi32>
    %c0_i32 = arith.constant 0 : i32
    %35 = vector.broadcast %c0_i32 : i32 to vector<2x128xi32>
    %36 = arith.cmpi ne, %34, %35 : vector<2x128xi32>
    %37 = arith.select %36, %32, %30 : vector<2x128xi1>, vector<2x128xf32>
    %38 = math.log %37 : vector<2x128xf32>
    %cst_31 = arith.constant -1.000000e+02 : f32
    %39 = vector.broadcast %cst_31 : f32 to vector<2x128xf32>
    %40 = arith.maximumf %38, %39 : vector<2x128xf32>
    %cst_32 = arith.constant 0.000000e+00 : f32
    %41 = vector.broadcast %cst_32 : f32 to vector<2x128xf32>
    %42 = arith.subf %41, %40 : vector<2x128xf32>
    %cst_33 = arith.constant 3.783510e-44 : f32
    %43 = vector.broadcast %cst_33 : f32 to vector<2x128xf32>
    %44 = arith.maximumf %37, %43 : vector<2x128xf32>
    %cst_34 = arith.constant 1.000000e+00 : f32
    %45 = vector.broadcast %cst_34 : f32 to vector<2x128xf32>
    %46 = arith.subf %45, %44 : vector<2x128xf32>
    %47 = arith.mulf %46, %46 : vector<2x128xf32>
    %48 = arith.mulf %47, %42 : vector<2x128xf32>
    %cst_35 = arith.constant dense<0.000000e+00> : vector<128xf32>
    %49 = vector.multi_reduction <add>, %48, %cst_35 [0] : vector<2x128xf32> to vector<128xf32>
    %c0_36 = arith.constant 0 : index
    %c0_37 = arith.constant 0 : index
    %c0_38 = arith.constant 0 : index
    %c0_39 = arith.constant 0 : index
    %50 = vector.load %arg4[%c0_36, %c0_37, %c0_38, %c0_39] : memref<1x1x1x128xf32, #tpu.memory_space<vmem>>, vector<1x1x1x128xf32>
    %51 = vector.shape_cast %50 : vector<1x1x1x128xf32> to vector<128xf32>
    %52 = vector.shape_cast %49 : vector<128xf32> to vector<1x1x1x128xf32>
    tpu.vector_store %arg4[%c0_36, %c0_37, %c0_38, %c0_39], %52 {strides = array<i32>} : memref<1x1x1x128xf32, #tpu.memory_space<vmem>>, vector<1x1x1x128xf32>,
    return
  }
  func.func @transform_0(%arg0: i32, %arg1: i32) -> (i32, i32, i32, i32) {
    %c0_i32 = arith.constant 0 : i32
    %c0_i32_0 = arith.constant 0 : i32
    %c0_i32_1 = arith.constant 0 : i32
    return %arg0, %c0_i32, %arg1, %c0_i32_0 : i32, i32, i32, i32
  }
  func.func @transform_1(%arg0: i32, %arg1: i32) -> (i32, i32, i32) {
    %c0_i32 = arith.constant 0 : i32
    %c0_i32_0 = arith.constant 0 : i32
    return %arg0, %arg1, %c0_i32 : i32, i32, i32
  }
  func.func @transform_2(%arg0: i32, %arg1: i32) -> (i32, i32, i32, i32) {
    %c0_i32 = arith.constant 0 : i32
    %c0_i32_0 = arith.constant 0 : i32
    %c0_i32_1 = arith.constant 0 : i32
    return %arg0, %arg1, %c0_i32, %c0_i32_0 : i32, i32, i32, i32
  }
}

</mosaic_0001>

<llo_original>
// kernel: tpu_custom_call.1
$region0: #{tpu_custom_call.1}
  #allocation0 [shape = 'u32[]', space=smem, size = 0x4, offset = 0x4, fixed_abs, tag = 'smem constant byte address 0x4 - core index']
  #allocation1 [shape = 'u32[72,128]{1,0:T(1,128)}', space=vmem, size = 0x9000, scoped, tag = 'internal scratch']
  %s0 = inlined_call_operand.hbm [shape: f32[2,4,2,128], index: 0, kind: input, shape index: {}]
  %s1 = inlined_call_operand.hbm [shape: s32[2,2,128], index: 1, kind: input, shape index: {}]
  %s2 = inlined_call_operand.hbm [shape: f32[2,1,1,128], index: 2, kind: output, shape index: {}]
  %s3 = sld [smem:[#allocation0]]
  $region49: #{tpu_custom_call.1} parent=0
    _
  %s5 = ssub.s32 1, %s3
  %s6 = scalar_select 0, %s5, %s3
  $region1: #{tpu_custom_call.1} parent=0
    #allocation2 [shape = 'u8[8192]{0}', space=vmem, size = 0x2000, scoped, tag = 'input window, operand 0']
    #allocation3 [shape = 's32[2]{0}', space=sflag, size = 0x8, scoped, tag = 'scoped memory for tpu_custom_call.1']
    #allocation4 [shape = 's32[2]{0}', space=sflag, size = 0x8, scoped, tag = 'scoped memory for tpu_custom_call.1']
    #allocation5 [shape = 'u8[2048]{0}', space=vmem, size = 0x800, scoped, tag = 'input window, operand 1']
    #allocation6 [shape = 's32[2]{0}', space=sflag, size = 0x8, scoped, tag = 'scoped memory for tpu_custom_call.1']
    #allocation7 [shape = 'u8[1024]{0}', space=vmem, size = 0x400, scoped, tag = 'output window, operand 0']
    %7 = vsyncpa [#allocation3], 0
    %s8 = scalar_lea.sflag [#allocation3], 1
    %9 = vsyncpa %s8, 0
    %10 = vsyncpa [#allocation6], 0
    %s11 = scalar_lea.sflag [#allocation6], 1
    %12 = vsyncpa %s11, 0
    %13 = vsyncpa [#allocation4], 0
    %s14 = scalar_lea.sflag [#allocation4], 1
    %15 = vsyncpa %s14, 0
    loop: start=0, step=1, limit=4
    $region2: #{tpu_custom_call.1} parent=1 // loop_pre_header
      _
    $region3: #{tpu_custom_call.1} parent=1 // loop_header
      %s17 = sphi 0, %s21
      %p18 = scmp.ge.s32.totalorder %s17, 4
      %s24 = sphi 0, %s36
      %s25 = sphi 0, %s32
      %s26 = sphi 0, %s24
      %s27 = sphi 0, %s25
      %s28 = sphi 0, %s26
      %s29 = sphi 0, %s27
      %s41 = sphi 0, %s43
      %s44 = sphi 0, %s41
      %s45 = sphi 0, %s44
      %s61 = sphi 0, %s45
      %s69 = sphi 0, %s71
      %s72 = sphi 0, %s69
      %s73 = sphi 0, %s72
      %s89 = sphi 0, %s73
      %s97 = sphi 0, %s99
      %s100 = sphi 0, %s97
      %s101 = sphi 0, %s100
      %s117 = sphi 0, %s101
    $region4: #{tpu_custom_call.1} parent=1 // loop_header_branch
      %20 = sbr.rel (%p18) target = $region8
    $region5: #{tpu_custom_call.1} parent=1 // loop_body
      %s22 = ssub.s32 %s17, 1
      %s23 = ssub.s32 %s17, 2
      %s30 = sadd.s32 1, %s25
      %p31 = scmp.ge.s32.totalorder %s30, 1
      %s32 = scalar_select %p31, 0, %s30
      %s33 = sadd.s32 1, %s24
      %s34 = scalar_select %p31, %s33, %s24
      %p35 = scmp.ge.s32.totalorder %s34, 2
      %s36 = scalar_select %p35, 0, %s34
      %s37 = ssub.s32 %s24, %s36
      %s38 = ssub.s32 %s25, %s32
      %s39 = sor.u32 %s37, %s38
      %p40 = scmp.eq.s32.totalorder %s39, 0
      %s42 = sadd.s32 %s41, 1
      %s43 = scalar_select %p40, %s41, %s42
      %p46 = pneg %p40
      %p47 = scmp.eq.s32.totalorder %s17, 1
      %p48 = por %p46, %p47
      %p49 = scmp.ne.s32.totalorder %s41, %s44
      %p50 = scmp.eq.s32.totalorder %s17, 0
      %p51 = por %p49, %p50
      %p52 = scmp.ne.s32.totalorder %s41, %s44
      %p53 = scmp.eq.s32.totalorder %s22, 1
      %p54 = por %p52, %p53
      %p55 = scmp.ne.s32.totalorder %s44, %s45
      %p56 = scmp.eq.s32.totalorder %s22, 0
      %p57 = por %p55, %p56
      %p58 = scmp.ne.s32.totalorder %s44, %s45
      %p59 = scmp.eq.s32.totalorder %s23, 1
      %p60 = por %p58, %p59
      %p62 = scmp.ne.s32.totalorder %s45, %s61
      %p63 = scmp.eq.s32.totalorder %s23, 0
      %p64 = por %p62, %p63
      %s65 = ssub.s32 %s24, %s36
      %s66 = ssub.s32 %s25, %s32
      %s67 = sor.u32 %s65, %s66
      %p68 = scmp.eq.s32.totalorder %s67, 0
      %s70 = sadd.s32 %s69, 1
      %s71 = scalar_select %p68, %s69, %s70
      %p74 = pneg %p68
      %p75 = scmp.eq.s32.totalorder %s17, 1
      %p76 = por %p74, %p75
      %p77 = scmp.ne.s32.totalorder %s69, %s72
      %p78 = scmp.eq.s32.totalorder %s17, 0
      %p79 = por %p77, %p78
      %p80 = scmp.ne.s32.totalorder %s69, %s72
      %p81 = scmp.eq.s32.totalorder %s22, 1
      %p82 = por %p80, %p81
      %p83 = scmp.ne.s32.totalorder %s72, %s73
      %p84 = scmp.eq.s32.totalorder %s22, 0
      %p85 = por %p83, %p84
      %p86 = scmp.ne.s32.totalorder %s72, %s73
      %p87 = scmp.eq.s32.totalorder %s23, 1
      %p88 = por %p86, %p87
      %p90 = scmp.ne.s32.totalorder %s73, %s89
      %p91 = scmp.eq.s32.totalorder %s23, 0
      %p92 = por %p90, %p91
      %s93 = ssub.s32 %s24, %s36
      %s94 = ssub.s32 %s25, %s32
      %s95 = sor.u32 %s93, %s94
      %p96 = scmp.eq.s32.totalorder %s95, 0
      %s98 = sadd.s32 %s97, 1
      %s99 = scalar_select %p96, %s97, %s98
      %p102 = pneg %p96
      %p103 = scmp.eq.s32.totalorder %s17, 1
      %p104 = por %p102, %p103
      %p105 = scmp.ne.s32.totalorder %s97, %s100
      %p106 = scmp.eq.s32.totalorder %s17, 0
      %p107 = por %p105, %p106
      %p108 = scmp.ne.s32.totalorder %s97, %s100
      %p109 = scmp.eq.s32.totalorder %s22, 1
      %p110 = por %p108, %p109
      %p111 = scmp.ne.s32.totalorder %s100, %s101
      %p112 = scmp.eq.s32.totalorder %s22, 0
      %p113 = por %p111, %p112
      %p114 = scmp.ne.s32.totalorder %s100, %s101
      %p115 = scmp.eq.s32.totalorder %s23, 1
      %p116 = por %p114, %p115
      %p118 = scmp.ne.s32.totalorder %s101, %s117
      %p119 = scmp.eq.s32.totalorder %s23, 0
      %p120 = por %p118, %p119
      %p121 = scmp.le.s32.totalorder 1, %s17
      %p122 = scmp.lt.s32.totalorder %s17, 3
      %p123 = pnand %p121, %p122
      %p124 = pneg %p123
      // Predicated region
      $region9: #{tpu_custom_call.1} parent=5 // pred_check
        _
      $region10: #{tpu_custom_call.1} parent=5 // pred_check_branch
        %126 = sbr.rel (%p123) target = $region12
      $region11: #{tpu_custom_call.1} parent=5 // pred_region
        %s127 = ssub.s32 %s17, 1
      $region12: #{tpu_custom_call.1} parent=5 // pred_fallthru
        _
      %p128 = scmp.lt.s32.totalorder %s17, 2
      // Predicated region
      $region13: #{tpu_custom_call.1} parent=5 // pred_check
        %p129 = pneg %p128
      $region14: #{tpu_custom_call.1} parent=5 // pred_check_branch
        %131 = sbr.rel (%p129) target = $region16
      $region15: #{tpu_custom_call.1} parent=5 // pred_region
        // Predicated region
        $region17: #{tpu_custom_call.1} parent=15 // pred_check
          %p132 = pneg %p51
        $region18: #{tpu_custom_call.1} parent=15 // pred_check_branch
          %134 = sbr.rel (%p132) target = $region20
        $region19: #{tpu_custom_call.1} parent=15 // pred_region
          %s135 = sand.u32 %s41, 1
          %s136 = scalar_lea.sflag [#allocation3], %s135
          %s137 = sand.u32 %s41, 1
          %s138 = smul.addr %s137, 8
          %s139 = scalar_lea.vmem [#allocation2], %s138
          %141 = vsyncadd %s136, 0
          %s142 = smul.addr %s24, 4
          %s143 = sadd.s32 %s25, %s142
          %s144 = smul.addr %s143, 2
          %s145 = scalar_lea.hbm %s0, %s144
          %s146 = sshll.u32 %s145, 4
          %s147 = int_to_ptr.hbm [resolvable:$true] %s146
          %s148 = sshll.u32 %s139, 4
          %s149 = int_to_ptr.vmem [resolvable:$true] %s148
          %154 = dma.hbm_to_vmem [thread:$0]  %s147, 128, %s149, %s136, 32, 32, 2
        $region20: #{tpu_custom_call.1} parent=15 // pred_fallthru
          _
        // Predicated region
        $region21: #{tpu_custom_call.1} parent=15 // pred_check
          %p155 = pneg %p79
        $region22: #{tpu_custom_call.1} parent=15 // pred_check_branch
          %157 = sbr.rel (%p155) target = $region24
        $region23: #{tpu_custom_call.1} parent=15 // pred_region
          %s158 = sand.u32 %s69, 1
          %s159 = scalar_lea.sflag [#allocation6], %s158
          %s160 = sand.u32 %s69, 1
          %s161 = smul.addr %s160, 2
          %s162 = scalar_lea.vmem [#allocation5], %s161
          %164 = vsyncadd %s159, 0
          %s165 = sadd.s32 %s25, %s24
          %s166 = smul.addr %s165, 2
          %s167 = scalar_lea.hbm %s1, %s166
          %s169 = sshll.u32 %s167, 4
          %s170 = int_to_ptr.hbm [resolvable:$true] %s169
          %s171 = sshll.u32 %s162, 4
          %s172 = int_to_ptr.vmem [resolvable:$true] %s171
          %174 = dma.hbm_to_vmem [thread:$0]  %s170, 32, %s172, %s159
        $region24: #{tpu_custom_call.1} parent=15 // pred_fallthru
          _
      $region16: #{tpu_custom_call.1} parent=5 // pred_fallthru
        _
      %p175 = scmp.le.s32.totalorder 1, %s17
      %p176 = scmp.lt.s32.totalorder %s17, 3
      %p177 = pnand %p175, %p176
      %p178 = pneg %p177
      // Predicated region
      $region25: #{tpu_custom_call.1} parent=5 // pred_check
        _
      $region26: #{tpu_custom_call.1} parent=5 // pred_check_branch
        %180 = sbr.rel (%p177) target = $region28
      $region27: #{tpu_custom_call.1} parent=5 // pred_region
        %s181 = ssub.s32 %s17, 1
        %s182 = sand.u32 %s44, 1
        %s183 = scalar_lea.sflag [#allocation3], %s182
        %s184 = sand.u32 %s44, 1
        %s185 = smul.addr %s184, 8
        %s186 = scalar_lea.vmem [#allocation2], %s185
        // Predicated region
        $region29: #{tpu_custom_call.1} parent=27 // pred_check
          %p187 = pneg %p57
        $region30: #{tpu_custom_call.1} parent=27 // pred_check_branch
          %189 = sbr.rel (%p187) target = $region32
        $region31: #{tpu_custom_call.1} parent=27 // pred_region
          %191 = dma.done %s183, 128
        $region32: #{tpu_custom_call.1} parent=27 // pred_fallthru
          _
        %s192 = sand.u32 %s72, 1
        %s193 = scalar_lea.sflag [#allocation6], %s192
        %s194 = sand.u32 %s72, 1
        %s195 = smul.addr %s194, 2
        %s196 = scalar_lea.vmem [#allocation5], %s195
        // Predicated region
        $region33: #{tpu_custom_call.1} parent=27 // pred_check
          %p197 = pneg %p85
        $region34: #{tpu_custom_call.1} parent=27 // pred_check_branch
          %199 = sbr.rel (%p197) target = $region36
        $region35: #{tpu_custom_call.1} parent=27 // pred_region
          %201 = dma.done %s193, 32
        $region36: #{tpu_custom_call.1} parent=27 // pred_fallthru
          _
        %s202 = sand.u32 %s44, 1
        %s203 = scalar_lea.sflag [#allocation3], %s202
        %s204 = sand.u32 %s44, 1
        %s205 = smul.addr %s204, 8
        %s206 = scalar_lea.vmem [#allocation2], %s205
        %p207 = pneg %p57
        %p208 = pneg %p54
        %s209 = sand.u32 %s72, 1
        %s210 = scalar_lea.sflag [#allocation6], %s209
        %s211 = sand.u32 %s72, 1
        %s212 = smul.addr %s211, 2
        %s213 = scalar_lea.vmem [#allocation5], %s212
        %p214 = pneg %p85
        %p215 = pneg %p82
        %p216 = pneg %p113
        %p217 = pneg %p110
        %s218 = sand.u32 %s100, 1
        %s219 = scalar_lea.sflag [#allocation4], %s218
        %s220 = sand.u32 %s100, 1
        %s221 = scalar_lea.vmem [#allocation7], %s220
        %v222 = vld [vmem:[%s186] sm:$0x3]
        %s223 = scalar_lea.vmem %s186, 2 [#allocation2]
        %v224 = vld [vmem:[%s223] sm:$0x3]
        %v225 = vmax.f32 %v222, %v224
        %s226 = scalar_lea.vmem %s186, 4 [#allocation2]
        %v227 = vld [vmem:[%s226] sm:$0x3]
        %v228 = vmax.f32 %v225, %v227
        %s229 = scalar_lea.vmem %s186, 6 [#allocation2]
        %v230 = vld [vmem:[%s229] sm:$0x3]
        %v231 = vmax.f32 %v228, %v230
        %v232 = vsub.f32 %v222, %v231
        %v233 = vmul.f32 %v232, 1.442695
        %v234 = vpow.pop %v233
        %v235 = vsub.f32 %v224, %v231
        %v236 = vmul.f32 %v235, 1.442695
        %v237 = vpow.pop %v236
        %v238 = vadd.f32 %v234, %v237
        %v239 = vsub.f32 %v227, %v231
        %v240 = vmul.f32 %v239, 1.442695
        %v241 = vpow.pop %v240
        %v242 = vadd.f32 %v238, %v241
        %v243 = vsub.f32 %v230, %v231
        %v244 = vmul.f32 %v243, 1.442695
        %v245 = vpow.pop %v244
        %v246 = vadd.f32 %v242, %v245
        %v247 = vrcp.pop %v246
        %v248 = vmul.f32 %v246, %v247
        %v249 = vsub.f32 1.0, %v248
        %v250 = vmul.f32 %v247, %v249
        %v251 = vadd.f32 %v247, %v250
        %vm252 = vweird.f32 %v246
        %vm253 = vweird.f32 %v247
        %vm254 = vmor %vm252, %vm253
        %v255 = vsel %vm254, %v247, %v251
        %v256 = vand.u32 2147483647, %v246
        %vm257 = vcmp.eq.f32.partialorder %v256, 8.507059e+37
        %v258 = vand.u32 %v246, 2147483648
        %v259 = vor.u32 1.1754944e-38, %v258
        %v260 = vsel %vm257, %v259, %v255
        %v261 = vmul.f32 %v234, %v260
        %v262 = vsub.f32 1.0, %v261
        %v263 = vld [vmem:[%s196] sm:$0x3]
        %vm264 = vcmp.ne.s32.totalorder %v263, 0
        %v265 = vsel %vm264, %v262, %v261
        %v266 = vlog2.pop %v265
        %v267 = vmul.f32 %v266, 0.6931472
        %v268 = vmax.f32 %v267, -100.0
        %v269 = vsub.f32 0.0, %v268
        %v270 = vmax.f32 %v265, 3.8e-44
        %v271 = vsub.f32 1.0, %v270
        %v272 = vmul.f32 %v271, %v271
        %v273 = vmul.f32 %v272, %v269
        %vm274 = vcmask 1041408
        %v275 = vsel %vm274, %v273, 0.0
        %v276 = vrot.slane %v275, 4
        %v277 = vadd.f32 %v275, %v276
        %v278 = vrot.slane %v277, 2
        %v279 = vadd.f32 %v277, %v278
        %v280 = vrot.slane %v279, 1
        %v281 = vadd.f32 %v279, %v280
        %282 = vst [vmem:[%s221] sm:$0x1] %v281
        %s283 = sand.u32 %s100, 1
        %s284 = scalar_lea.sflag [#allocation4], %s283
        %s285 = sand.u32 %s100, 1
        %s286 = scalar_lea.vmem [#allocation7], %s285
        // Predicated region
        $region37: #{tpu_custom_call.1} parent=27 // pred_check
          %p287 = pneg %p110
        $region38: #{tpu_custom_call.1} parent=27 // pred_check_branch
          %289 = sbr.rel (%p287) target = $region40
        $region39: #{tpu_custom_call.1} parent=27 // pred_region
          %291 = vsyncadd %s284, 0
          %s292 = sadd.s32 %s27, %s26
          %s293 = scalar_lea.hbm %s2, %s292
          %s295 = sshll.u32 %s286, 4
          %s296 = int_to_ptr.vmem [resolvable:$true] %s295
          %s297 = sshll.u32 %s293, 4
          %s298 = int_to_ptr.hbm [resolvable:$true] %s297
          %300 = dma.vmem_to_hbm [thread:$0]  %s296, 16, %s298, %s284
        $region40: #{tpu_custom_call.1} parent=27 // pred_fallthru
          _
      $region28: #{tpu_custom_call.1} parent=5 // pred_fallthru
        _
      %p301 = scmp.le.s32.totalorder 2, %s17
      // Predicated region
      $region41: #{tpu_custom_call.1} parent=5 // pred_check
        %p302 = pneg %p301
      $region42: #{tpu_custom_call.1} parent=5 // pred_check_branch
        %304 = sbr.rel (%p302) target = $region44
      $region43: #{tpu_custom_call.1} parent=5 // pred_region
        %s305 = ssub.s32 %s17, 2
        // Predicated region
        $region45: #{tpu_custom_call.1} parent=43 // pred_check
          %p306 = pneg %p116
        $region46: #{tpu_custom_call.1} parent=43 // pred_check_branch
          %308 = sbr.rel (%p306) target = $region48
        $region47: #{tpu_custom_call.1} parent=43 // pred_region
          %s309 = sand.u32 %s101, 1
          %s310 = scalar_lea.sflag [#allocation4], %s309
          %s311 = sand.u32 %s101, 1
          %s312 = scalar_lea.vmem [#allocation7], %s311
          %314 = dma.done %s310, 16
        $region48: #{tpu_custom_call.1} parent=43 // pred_fallthru
          _
      $region44: #{tpu_custom_call.1} parent=5 // pred_fallthru
        _
    $region6: #{tpu_custom_call.1} parent=1 // loop_footer
      %s21 = sadd.s32 1, %s17
    $region7: #{tpu_custom_call.1} parent=1 // loop_footer_branch
      %16 = sbr.rel target = $region3
    $region8: #{tpu_custom_call.1} parent=1 // loop_exit
      _
    %315 = vsyncpa [#allocation3], 1
    %s316 = scalar_lea.sflag [#allocation3], 1
    %317 = vsyncpa %s316, 1
    %318 = vsyncpa [#allocation6], 1
    %s319 = scalar_lea.sflag [#allocation6], 1
    %320 = vsyncpa %s319, 1
    %321 = vsyncpa [#allocation4], 1
    %s322 = scalar_lea.sflag [#allocation4], 1
    %323 = vsyncpa %s322, 1

</llo_original>
